<compile_context>
chip_gen: v7x
topology: tpu7x:2x2x1
jax: 0.10.0
libtpu: 0.0.40
codegen_flags: <defaults>
</compile_context>

<pallas_src>
import functools

import jax
import jax.numpy as jnp
from jax.experimental import pallas as pl
from jax.experimental.pallas import tpu as pltpu


def _critic_kernel(x_ref, w0_ref, b0_ref, w1_ref, b1_ref, w2_ref, b2_ref, o_ref,
                   *, compute_dtype):
    """One batch tile: (TB, S) -> (TB, 1)."""
    # In-kernel cast to the MXU operand dtype (VPU filler; avoids a wrapper-side
    # HBM cast pass).  No-op when compute_dtype == input dtype.
    x = x_ref[...].astype(compute_dtype)                              # (TB, S)
    # shared_net: Linear(state_dim, mid_dim) + ReLU   (f32 accumulation)
    h = jnp.dot(x, w0_ref[...], preferred_element_type=jnp.float32)   # (TB, mid)
    h = jnp.maximum(h + b0_ref[...], 0.0)
    # head layer 1: Linear(mid_dim, mid_dim) + ReLU
    h = jnp.dot(h.astype(compute_dtype), w1_ref[...],
                preferred_element_type=jnp.float32)                   # (TB, mid)
    h = jnp.maximum(h + b1_ref[...], 0.0)
    # head layer 2: Linear(mid_dim, 1) as broadcast-mul + lane reduce (VPU/XLU)
    v = jnp.sum(h * w2_ref[...], axis=-1, keepdims=True) + b2_ref[...]
    o_ref[...] = v.astype(o_ref.dtype)


def critic_forward(states, params, *, block_batch=2048, compute_dtype=jnp.bfloat16):
    """states: any shape whose squeeze() gives (batch, state_dim) (or (state_dim,)).

    compute_dtype=jnp.float32 is a supported fallback (exact torch math).
    Note: jnp.squeeze matches torch .squeeze() — it will also drop a size-1 batch
    dim (single-state path below), same latent hazard as the reference module.
    """
    w0, b0, w1, b1, w2, b2 = params

    x = jnp.squeeze(states)                  # matches torch .squeeze()
    single = (x.ndim == 1)                   # torch edge case: single state
    if single:
        x = x[None, :]
    B, S = x.shape
    mid = w0.shape[1]

    x_itemsize = jnp.dtype(x.dtype).itemsize
    w_itemsize = jnp.dtype(compute_dtype).itemsize
    align = 8 if x_itemsize >= 4 else 16     # sublane alignment for the batch tile

    # Resident parameter footprint in VMEM; single-buffer them when large.
    weight_bytes = (S * mid + mid * mid) * w_itemsize + (3 * mid + 1) * 4
    single_buffer_weights = weight_bytes > (1 << 20) and hasattr(pl, "Buffered")
    weight_resident = weight_bytes * (1 if single_buffer_weights else 2)

    # VMEM budget: ~70% of physical capacity (64 MiB on v7x, 128 MiB v5e/v6e).
    try:
        vmem_cap = int(pltpu.get_tpu_info().vmem_capacity_bytes)
    except Exception:
        vmem_cap = 64 << 20                  # safe lower bound across generations
    budget = int(vmem_cap * 0.7)
    per_row = 2 * S * x_itemsize + 2 * 4     # double-buffered x row + f32 out row
    tb_cap = max(align, (budget - weight_resident) // max(per_row, 1))
    tb_cap = int(min(tb_cap, block_batch))

    if B <= tb_cap:
        tb = B                               # single full-extent block (always legal)
    else:
        tb = max(align, (tb_cap // align) * align)
    grid = (pl.cdiv(B, tb),)                 # partial last block handled by Pallas

    # Explicit scoped-VMEM limit sized to actual need (>= 32 MiB, <= 90% physical).
    vmem_need = weight_resident + 2 * tb * S * x_itemsize + 2 * tb * 4
    vmem_limit = int(min(int(vmem_cap * 0.9), max(vmem_need + (4 << 20), 32 << 20)))

    # Weights as MXU operands in compute_dtype; biases / head row in f32.
    w0_c = w0.astype(compute_dtype)
    w1_c = w1.astype(compute_dtype)
    b0_f = b0.reshape(1, mid).astype(jnp.float32)
    b1_f = b1.reshape(1, mid).astype(jnp.float32)
    w2_r = w2.reshape(1, mid).astype(jnp.float32)
    b2_f = b2.reshape(1, 1).astype(jnp.float32)

    def resident(shape):
        idx = lambda i: (0, 0)               # constant index_map -> fetched once
        if single_buffer_weights:
            try:
                return pl.BlockSpec(shape, idx, pipeline_mode=pl.Buffered(1))
            except TypeError:                # older pl.BlockSpec without pipeline_mode
                pass
        return pl.BlockSpec(shape, idx)

    kernel = functools.partial(_critic_kernel, compute_dtype=compute_dtype)
    out = pl.pallas_call(
        kernel,
        out_shape=jax.ShapeDtypeStruct((B, 1), jnp.float32),
        grid=grid,
        in_specs=[
            pl.BlockSpec((tb, S), lambda i: (i, 0)),   # x: tiled over batch (input dtype)
            resident((S, mid)), resident((1, mid)),    # layer 0 (shared_net)
            resident((mid, mid)), resident((1, mid)),  # layer 1
            resident((1, mid)), resident((1, 1)),      # head row + bias
        ],
        out_specs=pl.BlockSpec((tb, 1), lambda i: (i, 0)),
        compiler_params=pltpu.CompilerParams(
            dimension_semantics=("parallel",),         # shard batch tiles across TCs (v7x)
            vmem_limit_bytes=vmem_limit,
        ),
    )(x, w0_c, b0_f, w1_c, b1_f, w2_r, b2_f)

    if single:
        out = out[0]        # torch returns shape (1,) for a single squeezed state
    return out


def init_params(key, state_dim, mid_dim):
    """Deterministic init mimicking nn.Linear default (uniform +-1/sqrt(fan_in))."""
    ks = jax.random.split(key, 6)

    def lin(kw, kb, fan_in, fan_out):
        bound = 1.0 / jnp.sqrt(fan_in)
        w = jax.random.uniform(kw, (fan_in, fan_out), jnp.float32, -bound, bound)
        b = jax.random.uniform(kb, (fan_out,), jnp.float32, -bound, bound)
        return w, b

    w0, b0 = lin(ks[0], ks[1], state_dim, mid_dim)   # shared_net Linear
    w1, b1 = lin(ks[2], ks[3], mid_dim, mid_dim)     # net[0]
    w2, b2 = lin(ks[4], ks[5], mid_dim, 1)           # net[2]
    return (w0, b0, w1, b1, w2, b2)


if __name__ == "__main__":
    key = jax.random.PRNGKey(0)
    k_x, k_p = jax.random.split(key)

    batch, state_dim, mid_dim = 40, 32, 32
    # states with a stray singleton dim, as the module's .squeeze() implies
    states = jax.random.normal(k_x, (batch, 1, state_dim), jnp.float32)
    params = init_params(k_p, state_dim, mid_dim)

    # Run 1: small tile so the demo exercises a multi-tile grid + a partial last
    # block (40 = 16 + 16 + 8) without any host-side padding.
    value = critic_forward(states, params, block_batch=16)
    value = jax.block_until_ready(value)
    assert value.shape == (batch, 1)
    assert value.dtype == jnp.float32

    # Run 2: default (large) tile -> single block covering the whole batch.
    value_big = jax.block_until_ready(critic_forward(states, params))
    assert jnp.allclose(value, value_big, atol=1e-6, rtol=1e-6)

    # Reference 1: identical math (bf16 MXU operands, f32 accumulation) in plain JAX.
    x = jnp.squeeze(states)
    w0, b0, w1, b1, w2, b2 = params
    xb, w0b, w1b = (a.astype(jnp.bfloat16) for a in (x, w0, w1))
    h = jnp.maximum(jnp.dot(xb, w0b, preferred_element_type=jnp.float32)
                    + b0.reshape(1, -1), 0.0)
    h = jnp.maximum(jnp.dot(h.astype(jnp.bfloat16), w1b,
                            preferred_element_type=jnp.float32)
                    + b1.reshape(1, -1), 0.0)
    ref_bf16 = jnp.sum(h * w2.reshape(1, -1), axis=-1, keepdims=True) + b2.reshape(1, 1)
    assert jnp.allclose(value, ref_bf16, atol=1e-4, rtol=1e-4)

    # Reference 2: pure-f32 torch-equivalent math (loose tolerance for bf16 operands).
    h = jnp.maximum(x @ w0 + b0.reshape(1, -1), 0.0)
    h = jnp.maximum(h @ w1 + b1.reshape(1, -1), 0.0)
    ref_f32 = h @ w2 + b2.reshape(1, 1)
    assert jnp.allclose(value, ref_f32, atol=1e-1, rtol=1e-1)

    # Reference 3: exact-f32 kernel path (compute_dtype fallback) against torch math.
    value_f32 = jax.block_until_ready(
        critic_forward(states, params, compute_dtype=jnp.float32))
    assert jnp.allclose(value_f32, ref_f32, atol=1e-5, rtol=1e-5)

    print("KERNEL_OK")
</pallas_src>

<mosaic_0001>
module attributes {stable_mosaic.version = 11 : i64} {
  func.func @_critic_kernel(%arg0: i32, %arg1: memref<16x32xf32, #tpu.memory_space<vmem>>, %arg2: memref<32x32xbf16, #tpu.memory_space<vmem>>, %arg3: memref<1x32xf32, #tpu.memory_space<vmem>>, %arg4: memref<32x32xbf16, #tpu.memory_space<vmem>>, %arg5: memref<1x32xf32, #tpu.memory_space<vmem>>, %arg6: memref<1x32xf32, #tpu.memory_space<vmem>>, %arg7: memref<1x1xf32, #tpu.memory_space<vmem>>, %arg8: memref<16x1xf32, #tpu.memory_space<vmem>>) attributes {dimension_semantics = [#tpu.dimension_semantics<parallel>], iteration_bounds = array<i64: 3>, scalar_prefetch = 0 : i64, scratch_operands = 0 : i64, tpu.core_type = #tpu.core_type<tc>, window_params = [{transform_indices = @transform_0, window_bounds = array<i64: 16, 32>}, {pipeline_mode = #tpu.pipeline_mode<synchronous>, transform_indices = @transform_1, window_bounds = array<i64: 32, 32>}, {pipeline_mode = #tpu.pipeline_mode<synchronous>, transform_indices = @transform_2, window_bounds = array<i64: 1, 32>}, {pipeline_mode = #tpu.pipeline_mode<synchronous>, transform_indices = @transform_3, window_bounds = array<i64: 32, 32>}, {pipeline_mode = #tpu.pipeline_mode<synchronous>, transform_indices = @transform_4, window_bounds = array<i64: 1, 32>}, {pipeline_mode = #tpu.pipeline_mode<synchronous>, transform_indices = @transform_5, window_bounds = array<i64: 1, 32>}, {pipeline_mode = #tpu.pipeline_mode<synchronous>, transform_indices = @transform_6, window_bounds = array<i64: 1, 1>}, {transform_indices = @transform_7, window_bounds = array<i64: 16, 1>}]} {
    %c0 = arith.constant 0 : index
    %c0_0 = arith.constant 0 : index
    %0 = vector.load %arg1[%c0, %c0_0] : memref<16x32xf32, #tpu.memory_space<vmem>>, vector<16x32xf32>
    %1 = arith.truncf %0 : vector<16x32xf32> to vector<16x32xbf16>
    %c0_1 = arith.constant 0 : index
    %c0_2 = arith.constant 0 : index
    %2 = vector.load %arg2[%c0_1, %c0_2] : memref<32x32xbf16, #tpu.memory_space<vmem>>, vector<32x32xbf16>
    %cst = arith.constant dense<0.000000e+00> : vector<16x32xf32>
    %3 = tpu.matmul %1, %2, %cst {dimension_numbers = #tpu.dot_dimension_numbers<[1], [0], [0], [1], [0, 0, 1, 1], [], []>} : vector<16x32xbf16>, vector<32x32xbf16>, vector<16x32xf32> -> vector<16x32xf32>
    %c0_3 = arith.constant 0 : index
    %c0_4 = arith.constant 0 : index
    %4 = vector.load %arg3[%c0_3, %c0_4] : memref<1x32xf32, #tpu.memory_space<vmem>>, vector<1x32xf32>
    %5 = vector.broadcast %4 : vector<1x32xf32> to vector<16x32xf32>
    %6 = arith.addf %3, %5 : vector<16x32xf32>
    %cst_5 = arith.constant 0.000000e+00 : f32
    %7 = vector.broadcast %cst_5 : f32 to vector<16x32xf32>
    %8 = arith.maximumf %6, %7 : vector<16x32xf32>
    %9 = arith.truncf %8 : vector<16x32xf32> to vector<16x32xbf16>
    %c0_6 = arith.constant 0 : index
    %c0_7 = arith.constant 0 : index
    %10 = vector.load %arg4[%c0_6, %c0_7] : memref<32x32xbf16, #tpu.memory_space<vmem>>, vector<32x32xbf16>
    %cst_8 = arith.constant dense<0.000000e+00> : vector<16x32xf32>
    %11 = tpu.matmul %9, %10, %cst_8 {dimension_numbers = #tpu.dot_dimension_numbers<[1], [0], [0], [1], [0, 0, 1, 1], [], []>} : vector<16x32xbf16>, vector<32x32xbf16>, vector<16x32xf32> -> vector<16x32xf32>
    %c0_9 = arith.constant 0 : index
    %c0_10 = arith.constant 0 : index
    %12 = vector.load %arg5[%c0_9, %c0_10] : memref<1x32xf32, #tpu.memory_space<vmem>>, vector<1x32xf32>
    %13 = vector.broadcast %12 : vector<1x32xf32> to vector<16x32xf32>
    %14 = arith.addf %11, %13 : vector<16x32xf32>
    %cst_11 = arith.constant 0.000000e+00 : f32
    %15 = vector.broadcast %cst_11 : f32 to vector<16x32xf32>
    %16 = arith.maximumf %14, %15 : vector<16x32xf32>
    %c0_12 = arith.constant 0 : index
    %c0_13 = arith.constant 0 : index
    %17 = vector.load %arg6[%c0_12, %c0_13] : memref<1x32xf32, #tpu.memory_space<vmem>>, vector<1x32xf32>
    %18 = vector.broadcast %17 : vector<1x32xf32> to vector<16x32xf32>
    %19 = arith.mulf %16, %18 : vector<16x32xf32>
    %cst_14 = arith.constant dense<0.000000e+00> : vector<16xf32>
    %20 = vector.multi_reduction <add>, %19, %cst_14 [1] : vector<16x32xf32> to vector<16xf32>
    %21 = vector.shape_cast %20 : vector<16xf32> to vector<16x1xf32>
    %c0_15 = arith.constant 0 : index
    %c0_16 = arith.constant 0 : index
    %22 = vector.load %arg7[%c0_15, %c0_16] : memref<1x1xf32, #tpu.memory_space<vmem>>, vector<1x1xf32>
    %23 = vector.broadcast %22 : vector<1x1xf32> to vector<16x1xf32>
    %24 = arith.addf %21, %23 : vector<16x1xf32>
    %c0_17 = arith.constant 0 : index
    %c0_18 = arith.constant 0 : index
    %25 = vector.load %arg8[%c0_17, %c0_18] : memref<16x1xf32, #tpu.memory_space<vmem>>, vector<16x1xf32>
    tpu.vector_store %arg8[%c0_17, %c0_18], %24 {strides = array<i32>} : memref<16x1xf32, #tpu.memory_space<vmem>>, vector<16x1xf32>,
    return
  }
  func.func @transform_0(%arg0: i32) -> (i32, i32) {
    %c0_i32 = arith.constant 0 : i32
    %c0_i32_0 = arith.constant 0 : i32
    return %arg0, %c0_i32 : i32, i32
  }
  func.func @transform_1(%arg0: i32) -> (i32, i32) {
    %c0_i32 = arith.constant 0 : i32
    %c0_i32_0 = arith.constant 0 : i32
    %c0_i32_1 = arith.constant 0 : i32
    return %c0_i32, %c0_i32_0 : i32, i32
  }
  func.func @transform_2(%arg0: i32) -> (i32, i32) {
    %c0_i32 = arith.constant 0 : i32
    %c0_i32_0 = arith.constant 0 : i32
    %c0_i32_1 = arith.constant 0 : i32
    return %c0_i32, %c0_i32_0 : i32, i32
  }
  func.func @transform_3(%arg0: i32) -> (i32, i32) {
    %c0_i32 = arith.constant 0 : i32
    %c0_i32_0 = arith.constant 0 : i32
    %c0_i32_1 = arith.constant 0 : i32
    return %c0_i32, %c0_i32_0 : i32, i32
  }
  func.func @transform_4(%arg0: i32) -> (i32, i32) {
    %c0_i32 = arith.constant 0 : i32
    %c0_i32_0 = arith.constant 0 : i32
    %c0_i32_1 = arith.constant 0 : i32
    return %c0_i32, %c0_i32_0 : i32, i32
  }
  func.func @transform_5(%arg0: i32) -> (i32, i32) {
    %c0_i32 = arith.constant 0 : i32
    %c0_i32_0 = arith.constant 0 : i32
    %c0_i32_1 = arith.constant 0 : i32
    return %c0_i32, %c0_i32_0 : i32, i32
  }
  func.func @transform_6(%arg0: i32) -> (i32, i32) {
    %c0_i32 = arith.constant 0 : i32
    %c0_i32_0 = arith.constant 0 : i32
    %c0_i32_1 = arith.constant 0 : i32
    return %c0_i32, %c0_i32_0 : i32, i32
  }
  func.func @transform_7(%arg0: i32) -> (i32, i32) {
    %c0_i32 = arith.constant 0 : i32
    %c0_i32_0 = arith.constant 0 : i32
    return %arg0, %c0_i32 : i32, i32
  }
}

</mosaic_0001>

<llo_original>
// kernel: tpu_custom_call.1
$region0: #{tpu_custom_call.1}
  #allocation0 [shape = 'u32[]', space=smem, size = 0x4, offset = 0x4, fixed_abs, tag = 'smem constant byte address 0x4 - core index']
  #allocation1 [shape = 'u32[144,128]{1,0:T(1,128)}', space=vmem, size = 0x12000, scoped, tag = 'internal scratch']
  #allocation2 [shape = 'f32[1,1]{1,0:T(1,128)S(1)}', space=vmem, size = 0x200, scoped, tag = 'scoped memory for tpu_custom_call.1']
  %s0 = inlined_call_operand.vmem [shape: f32[40,32], index: 0, kind: input, shape index: {}]
  %s1 = inlined_call_operand.vmem [shape: bf16[32,32], index: 1, kind: input, shape index: {}]
  %s2 = inlined_call_operand.vmem [shape: f32[1,32], index: 2, kind: input, shape index: {}]
  %s3 = inlined_call_operand.vmem [shape: bf16[32,32], index: 3, kind: input, shape index: {}]
  %s4 = inlined_call_operand.vmem [shape: f32[1,32], index: 4, kind: input, shape index: {}]
  %s5 = inlined_call_operand.vmem [shape: f32[1,32], index: 5, kind: input, shape index: {}]
  %s6 = inlined_call_operand.<no memory space> [shape: f32[1,1], index: 6, kind: input, shape index: {}]
  %s7 = inlined_call_operand.vmem [shape: f32[40,1], index: 7, kind: output, shape index: {}]
  %s8 = sld [smem:[#allocation0]]
  $region109: #{tpu_custom_call.1} parent=0
    _
  %s10 = ssub.s32 1, %s8
  %s11 = scalar_select 0, %s10, %s8
  %v12 = vstv %s6
  %13 = vst [vmem:[#allocation2] sm:$0x1] %v12
  $region1: #{tpu_custom_call.1} parent=0
    #allocation3 [shape = 'u8[16384]{0}', space=vmem, size = 0x4000, scoped, tag = 'output window, operand 0']
    loop: start=0, step=1, limit=5
    $region2: #{tpu_custom_call.1} parent=1 // loop_pre_header
      _
    $region3: #{tpu_custom_call.1} parent=1 // loop_header
      %s15 = sphi 0, %s19
      %p16 = scmp.ge.s32.totalorder %s15, 5
      %s25 = sphi 0, %s27
      %s28 = sphi 0, %s25
      %s29 = sphi 0, %s28
      %s45 = sphi 0, %s29
      %s49 = sphi 0, %s49
      %s51 = sphi 0, %s49
      %s52 = sphi 0, %s51
      %s66 = sphi 0, %s52
      %s70 = sphi 0, %s70
      %s72 = sphi 0, %s70
      %s73 = sphi 0, %s72
      %s87 = sphi 0, %s73
      %s91 = sphi 0, %s91
      %s93 = sphi 0, %s91
      %s94 = sphi 0, %s93
      %s108 = sphi 0, %s94
      %s112 = sphi 0, %s112
      %s114 = sphi 0, %s112
      %s115 = sphi 0, %s114
      %s129 = sphi 0, %s115
      %s133 = sphi 0, %s133
      %s135 = sphi 0, %s133
      %s136 = sphi 0, %s135
      %s150 = sphi 0, %s136
      %s154 = sphi 0, %s154
      %s156 = sphi 0, %s154
      %s157 = sphi 0, %s156
      %s171 = sphi 0, %s157
      %s177 = sphi 0, %s179
      %s180 = sphi 0, %s177
      %s181 = sphi 0, %s180
      %s197 = sphi 0, %s181
    $region4: #{tpu_custom_call.1} parent=1 // loop_header_branch
      %18 = sbr.rel (%p16) target = $region8
    $region5: #{tpu_custom_call.1} parent=1 // loop_body
      %s20 = ssub.s32 %s15, 1
      %s21 = ssub.s32 %s15, 2
      %s22 = sadd.s32 %s15, 1
      %s23 = ssub.s32 %s15, %s22
      %p24 = scmp.eq.s32.totalorder %s23, 0
      %s26 = sadd.s32 %s25, 1
      %s27 = scalar_select %p24, %s25, %s26
      %p30 = pneg %p24
      %p31 = scmp.eq.s32.totalorder %s15, 2
      %p32 = por %p30, %p31
      %p33 = scmp.ne.s32.totalorder %s25, %s28
      %p34 = scmp.eq.s32.totalorder %s15, 0
      %p35 = por %p33, %p34
      %p36 = scmp.ne.s32.totalorder %s25, %s28
      %p37 = scmp.eq.s32.totalorder %s20, 2
      %p38 = por %p36, %p37
      %p39 = scmp.ne.s32.totalorder %s28, %s29
      %p40 = scmp.eq.s32.totalorder %s20, 0
      %p41 = por %p39, %p40
      %p42 = scmp.ne.s32.totalorder %s28, %s29
      %p43 = scmp.eq.s32.totalorder %s21, 2
      %p44 = por %p42, %p43
      %p46 = scmp.ne.s32.totalorder %s29, %s45
      %p47 = scmp.eq.s32.totalorder %s21, 0
      %p48 = por %p46, %p47
      %s50 = sadd.s32 %s49, 1
      %p53 = scmp.eq.s32.totalorder %s15, 2
      %p54 = scmp.ne.s32.totalorder %s49, %s51
      %p55 = scmp.eq.s32.totalorder %s15, 0
      %p56 = por %p54, %p55
      %p57 = scmp.ne.s32.totalorder %s49, %s51
      %p58 = scmp.eq.s32.totalorder %s20, 2
      %p59 = por %p57, %p58
      %p60 = scmp.ne.s32.totalorder %s51, %s52
      %p61 = scmp.eq.s32.totalorder %s20, 0
      %p62 = por %p60, %p61
      %p63 = scmp.ne.s32.totalorder %s51, %s52
      %p64 = scmp.eq.s32.totalorder %s21, 2
      %p65 = por %p63, %p64
      %p67 = scmp.ne.s32.totalorder %s52, %s66
      %p68 = scmp.eq.s32.totalorder %s21, 0
      %p69 = por %p67, %p68
      %s71 = sadd.s32 %s70, 1
      %p74 = scmp.eq.s32.totalorder %s15, 2
      %p75 = scmp.ne.s32.totalorder %s70, %s72
      %p76 = scmp.eq.s32.totalorder %s15, 0
      %p77 = por %p75, %p76
      %p78 = scmp.ne.s32.totalorder %s70, %s72
      %p79 = scmp.eq.s32.totalorder %s20, 2
      %p80 = por %p78, %p79
      %p81 = scmp.ne.s32.totalorder %s72, %s73
      %p82 = scmp.eq.s32.totalorder %s20, 0
      %p83 = por %p81, %p82
      %p84 = scmp.ne.s32.totalorder %s72, %s73
      %p85 = scmp.eq.s32.totalorder %s21, 2
      %p86 = por %p84, %p85
      %p88 = scmp.ne.s32.totalorder %s73, %s87
      %p89 = scmp.eq.s32.totalorder %s21, 0
      %p90 = por %p88, %p89
      %s92 = sadd.s32 %s91, 1
      %p95 = scmp.eq.s32.totalorder %s15, 2
      %p96 = scmp.ne.s32.totalorder %s91, %s93
      %p97 = scmp.eq.s32.totalorder %s15, 0
      %p98 = por %p96, %p97
      %p99 = scmp.ne.s32.totalorder %s91, %s93
      %p100 = scmp.eq.s32.totalorder %s20, 2
      %p101 = por %p99, %p100
      %p102 = scmp.ne.s32.totalorder %s93, %s94
      %p103 = scmp.eq.s32.totalorder %s20, 0
      %p104 = por %p102, %p103
      %p105 = scmp.ne.s32.totalorder %s93, %s94
      %p106 = scmp.eq.s32.totalorder %s21, 2
      %p107 = por %p105, %p106
      %p109 = scmp.ne.s32.totalorder %s94, %s108
      %p110 = scmp.eq.s32.totalorder %s21, 0
      %p111 = por %p109, %p110
      %s113 = sadd.s32 %s112, 1
      %p116 = scmp.eq.s32.totalorder %s15, 2
      %p117 = scmp.ne.s32.totalorder %s112, %s114
      %p118 = scmp.eq.s32.totalorder %s15, 0
      %p119 = por %p117, %p118
      %p120 = scmp.ne.s32.totalorder %s112, %s114
      %p121 = scmp.eq.s32.totalorder %s20, 2
      %p122 = por %p120, %p121
      %p123 = scmp.ne.s32.totalorder %s114, %s115
      %p124 = scmp.eq.s32.totalorder %s20, 0
      %p125 = por %p123, %p124
      %p126 = scmp.ne.s32.totalorder %s114, %s115
      %p127 = scmp.eq.s32.totalorder %s21, 2
      %p128 = por %p126, %p127
      %p130 = scmp.ne.s32.totalorder %s115, %s129
      %p131 = scmp.eq.s32.totalorder %s21, 0
      %p132 = por %p130, %p131
      %s134 = sadd.s32 %s133, 1
      %p137 = scmp.eq.s32.totalorder %s15, 2
      %p138 = scmp.ne.s32.totalorder %s133, %s135
      %p139 = scmp.eq.s32.totalorder %s15, 0
      %p140 = por %p138, %p139
      %p141 = scmp.ne.s32.totalorder %s133, %s135
      %p142 = scmp.eq.s32.totalorder %s20, 2
      %p143 = por %p141, %p142
      %p144 = scmp.ne.s32.totalorder %s135, %s136
      %p145 = scmp.eq.s32.totalorder %s20, 0
      %p146 = por %p144, %p145
      %p147 = scmp.ne.s32.totalorder %s135, %s136
      %p148 = scmp.eq.s32.totalorder %s21, 2
      %p149 = por %p147, %p148
      %p151 = scmp.ne.s32.totalorder %s136, %s150
      %p152 = scmp.eq.s32.totalorder %s21, 0
      %p153 = por %p151, %p152
      %s155 = sadd.s32 %s154, 1
      %p158 = scmp.eq.s32.totalorder %s15, 2
      %p159 = scmp.ne.s32.totalorder %s154, %s156
      %p160 = scmp.eq.s32.totalorder %s15, 0
      %p161 = por %p159, %p160
      %p162 = scmp.ne.s32.totalorder %s154, %s156
      %p163 = scmp.eq.s32.totalorder %s20, 2
      %p164 = por %p162, %p163
      %p165 = scmp.ne.s32.totalorder %s156, %s157
      %p166 = scmp.eq.s32.totalorder %s20, 0
      %p167 = por %p165, %p166
      %p168 = scmp.ne.s32.totalorder %s156, %s157
      %p169 = scmp.eq.s32.totalorder %s21, 2
      %p170 = por %p168, %p169
      %p172 = scmp.ne.s32.totalorder %s157, %s171
      %p173 = scmp.eq.s32.totalorder %s21, 0
      %p174 = por %p172, %p173
      %s175 = ssub.s32 %s15, %s22
      %p176 = scmp.eq.s32.totalorder %s175, 0
      %s178 = sadd.s32 %s177, 1
      %s179 = scalar_select %p176, %s177, %s178
      %p182 = pneg %p176
      %p183 = scmp.eq.s32.totalorder %s15, 2
      %p184 = por %p182, %p183
      %p185 = scmp.ne.s32.totalorder %s177, %s180
      %p186 = scmp.eq.s32.totalorder %s15, 0
      %p187 = por %p185, %p186
      %p188 = scmp.ne.s32.totalorder %s177, %s180
      %p189 = scmp.eq.s32.totalorder %s20, 2
      %p190 = por %p188, %p189
      %p191 = scmp.ne.s32.totalorder %s180, %s181
      %p192 = scmp.eq.s32.totalorder %s20, 0
      %p193 = por %p191, %p192
      %p194 = scmp.ne.s32.totalorder %s180, %s181
      %p195 = scmp.eq.s32.totalorder %s21, 2
      %p196 = por %p194, %p195
      %p198 = scmp.ne.s32.totalorder %s181, %s197
      %p199 = scmp.eq.s32.totalorder %s21, 0
      %p200 = por %p198, %p199
      %p201 = scmp.le.s32.totalorder 1, %s15
      %p202 = scmp.lt.s32.totalorder %s15, 4
      %p203 = pnand %p201, %p202
      %p204 = pneg %p203
      // Predicated region
      $region9: #{tpu_custom_call.1} parent=5 // pred_check
        _
      $region10: #{tpu_custom_call.1} parent=5 // pred_check_branch
        %206 = sbr.rel (%p203) target = $region12
      $region11: #{tpu_custom_call.1} parent=5 // pred_region
        %s207 = ssub.s32 %s15, 1
        // Predicated region
        $region13: #{tpu_custom_call.1} parent=11 // pred_check
          %p208 = pneg %p62
        $region14: #{tpu_custom_call.1} parent=11 // pred_check_branch
          %210 = sbr.rel (%p208) target = $region16
        $region15: #{tpu_custom_call.1} parent=11 // pred_region
          _
        $region16: #{tpu_custom_call.1} parent=11 // pred_fallthru
          _
        // Predicated region
        $region17: #{tpu_custom_call.1} parent=11 // pred_check
          %p211 = pneg %p83
        $region18: #{tpu_custom_call.1} parent=11 // pred_check_branch
          %213 = sbr.rel (%p211) target = $region20
        $region19: #{tpu_custom_call.1} parent=11 // pred_region
          _
        $region20: #{tpu_custom_call.1} parent=11 // pred_fallthru
          _
        // Predicated region
        $region21: #{tpu_custom_call.1} parent=11 // pred_check
          %p214 = pneg %p104
        $region22: #{tpu_custom_call.1} parent=11 // pred_check_branch
          %216 = sbr.rel (%p214) target = $region24
        $region23: #{tpu_custom_call.1} parent=11 // pred_region
          _
        $region24: #{tpu_custom_call.1} parent=11 // pred_fallthru
          _
        // Predicated region
        $region25: #{tpu_custom_call.1} parent=11 // pred_check
          %p217 = pneg %p125
        $region26: #{tpu_custom_call.1} parent=11 // pred_check_branch
          %219 = sbr.rel (%p217) target = $region28
        $region27: #{tpu_custom_call.1} parent=11 // pred_region
          _
        $region28: #{tpu_custom_call.1} parent=11 // pred_fallthru
          _
        // Predicated region
        $region29: #{tpu_custom_call.1} parent=11 // pred_check
          %p220 = pneg %p146
        $region30: #{tpu_custom_call.1} parent=11 // pred_check_branch
          %222 = sbr.rel (%p220) target = $region32
        $region31: #{tpu_custom_call.1} parent=11 // pred_region
          _
        $region32: #{tpu_custom_call.1} parent=11 // pred_fallthru
          _
        // Predicated region
        $region33: #{tpu_custom_call.1} parent=11 // pred_check
          %p223 = pneg %p167
        $region34: #{tpu_custom_call.1} parent=11 // pred_check_branch
          %225 = sbr.rel (%p223) target = $region36
        $region35: #{tpu_custom_call.1} parent=11 // pred_region
          _
        $region36: #{tpu_custom_call.1} parent=11 // pred_fallthru
          _
      $region12: #{tpu_custom_call.1} parent=5 // pred_fallthru
        _
      %p226 = scmp.lt.s32.totalorder %s15, 3
      // Predicated region
      $region37: #{tpu_custom_call.1} parent=5 // pred_check
        %p227 = pneg %p226
      $region38: #{tpu_custom_call.1} parent=5 // pred_check_branch
        %229 = sbr.rel (%p227) target = $region40
      $region39: #{tpu_custom_call.1} parent=5 // pred_region
        // Predicated region
        $region41: #{tpu_custom_call.1} parent=39 // pred_check
          %p230 = pneg %p35
        $region42: #{tpu_custom_call.1} parent=39 // pred_check_branch
          %232 = sbr.rel (%p230) target = $region44
        $region43: #{tpu_custom_call.1} parent=39 // pred_region
          %s233 = smul.u32 2, %s15
          %s234 = ssub.s32 5, %s233
          %p235 = scmp.lt.s32.totalorder %s234, 2
          %s236 = scalar_select %p235, %s234, 2
          %s237 = smul.u32 128, %s236
          %p238 = scmp.lt.s32.totalorder %s233, 4
          %s239 = scalar_select %p238, %s233, 4
          %s240 = smul.addr %s239, 8
          %s241 = scalar_lea.vmem %s0, %s240
          %s242 = smul.u32 2, %s15
          %s243 = ssub.s32 5, %s242
          %p244 = scmp.lt.s32.totalorder %s243, 2
          %s245 = scalar_select %p244, %s243, 2
          %s246 = smul.u32 128, %s245
        $region44: #{tpu_custom_call.1} parent=39 // pred_fallthru
          _
      $region40: #{tpu_custom_call.1} parent=5 // pred_fallthru
        _
      %p247 = scmp.le.s32.totalorder 1, %s15
      %p248 = scmp.lt.s32.totalorder %s15, 4
      %p249 = pnand %p247, %p248
      %p250 = pneg %p249
      // Predicated region
      $region45: #{tpu_custom_call.1} parent=5 // pred_check
        _
      $region46: #{tpu_custom_call.1} parent=5 // pred_check_branch
        %252 = sbr.rel (%p249) target = $region48
      $region47: #{tpu_custom_call.1} parent=5 // pred_region
        %s253 = ssub.s32 %s15, 1
        %s254 = smul.u32 2, %s20
        %s255 = ssub.s32 5, %s254
        %p256 = scmp.lt.s32.totalorder %s255, 2
        %s257 = scalar_select %p256, %s255, 2
        %s258 = smul.u32 128, %s257
        %p259 = scmp.lt.s32.totalorder %s254, 4
        %s260 = scalar_select %p259, %s254, 4
        %s261 = smul.addr %s260, 8
        %s262 = scalar_lea.vmem %s0, %s261
        %p263 = pneg %p41
        %p264 = pneg %p38
        %p265 = pneg %p62
        %p266 = pneg %p59
        %p267 = pneg %p83
        %p268 = pneg %p80
        %p269 = pneg %p104
        %p270 = pneg %p101
        %p271 = pneg %p125
        %p272 = pneg %p122
        %p273 = pneg %p146
        %p274 = pneg %p143
        %p275 = pneg %p167
        %p276 = pneg %p164
        %p277 = pneg %p193
        %p278 = pneg %p190
        %s279 = sand.u32 %s180, 1
        %s280 = sand.u32 %s180, 1
        %s281 = smul.addr %s280, 16
        %s282 = scalar_lea.vmem [#allocation3], %s281
        %s283 = smul.u32 2, %s20
        %s284 = ssub.s32 5, %s283
        %p285 = scmp.lt.s32.totalorder %s284, 2
        %s286 = scalar_select %p285, %s284, 2
        %s287 = smul.u32 128, %s286
        %p288 = scmp.lt.s32.totalorder %s283, 4
        %s289 = scalar_select %p288, %s283, 4
        %s290 = smul.addr %s289, 8
        %s291 = scalar_lea.vmem %s0, %s290
        %s292 = smul.u32 2, %s20
        %s293 = ssub.s32 5, %s292
        %p294 = scmp.lt.s32.totalorder %s293, 2
        %s295 = scalar_select %p294, %s293, 2
        %s296 = smul.u32 128, %s295
        %s297 = smul.u32 2, %s20
        %s298 = ssub.s32 5, %s297
        %p299 = scmp.lt.s32.totalorder %s298, 2
        %s300 = scalar_select %p299, %s298, 2
        %s301 = smul.u32 128, %s300
        %v303 = vld [vmem:[%s291] sm:$0xff]
        %v304 = vld [vmem:[%s291 + $0x8] sm:$0xff]
        %v305 = vpack.c.bf16 %v304, %v303
        %v306 = vld [vmem:[%s1] sm:$0xf]
        %v307 = vld [vmem:[%s1 + $0x4] sm:$0xf]
        %v308 = vld [vmem:[%s1 + $0x8] sm:$0xf]
        %v309 = vld [vmem:[%s1 + $0xc] sm:$0xf]
        %v310 = vld [vmem:[%s2] sm:$0x1]
        %v312 = vlaneseq
        %v313 = vshrl.u32 %v312, 7
        %v314 = vsub.s32 0, %v313
        %v315 = vrot.slane %v310, %v314
        %v321 = vunpack.c.l.b16 %v306
        %v322 = vunpack.c.l.b16 %v307
        %v323 = vunpack.c.l.b16 %v308
        %v324 = vunpack.c.l.b16 %v309
        %v325 = vpack.c.b16 %v322, %v321
        %v326 = vpack.c.b16 %v324, %v323
        %vm329 = vcmask 261120
        %v331 = vsel %vm329, %v305, 0
        %333 = vmatprep.subr.bf16.mxu0 0
        %334 = vmatpush1.bf16.msra.mxu0 %v325
        %335 = vmatprep.subr.bf16.mxu0 0
        %336 = vmatpush1.bf16.msra.mxu0 %v326
        %337 = vmatprep.subr.bf16.mxu0 0
        %338 = vmatpush1.bf16.msra.mxu0 0
        %339 = vmatprep.subr.bf16.mxu0 0
        %340 = vmatpush1.bf16.msra.mxu0 0
        %341 = vmatprep.subr.bf16.mxu0 0
        %342 = vmatpush1.bf16.msra.mxu0 0
        %343 = vmatprep.subr.bf16.mxu0 0
        %344 = vmatpush1.bf16.msra.mxu0 0
        %345 = vmatprep.subr.bf16.mxu0 0
        %346 = vmatpush1.bf16.msra.mxu0 0
        %347 = vmatprep.subr.bf16.mxu0 0
        %348 = vmatpush1.bf16.msra.mxu0 0
        %349 = vmatprep.subr.bf16.mxu0 0
        %350 = vmatpush1.bf16.msra.mxu0 0
        %351 = vmatprep.subr.bf16.mxu0 0
        %352 = vmatpush1.bf16.msra.mxu0 0
        %353 = vmatprep.subr.bf16.mxu0 0
        %354 = vmatpush1.bf16.msra.mxu0 0
        %355 = vmatprep.subr.bf16.mxu0 0
        %356 = vmatpush1.bf16.msra.mxu0 0
        %357 = vmatprep.subr.bf16.mxu0 0
        %358 = vmatpush1.bf16.msra.mxu0 0
        %359 = vmatprep.subr.bf16.mxu0 0
        %360 = vmatpush1.bf16.msra.mxu0 0
        %361 = vmatprep.subr.bf16.mxu0 0
        %362 = vmatpush1.bf16.msra.mxu0 0
        %363 = vmatprep.subr.bf16.mxu0 0
        %364 = vmatpush1.bf16.msra.mxu0 0
        %365 = vmatprep.mubr.bf16.mxu0 0
        %366 = vmatmul.mubr.bf16.gmra.mrb[0].mxu0 %v331
        %v367 = vpop.f32.mrb[0].mxu0
        %v368 = vadd.f32 %v315, %v367
        %v369 = vpop.f32.mrb[0].mxu0
        %v370 = vpop.f32.mrb[0].mxu0
        %v371 = vadd.f32 %v315, %v370
        %v372 = vpop.f32.mrb[0].mxu0
        %373 = vdwg.mxu0
        %v374 = vmax.f32 %v368, 0.0
        %v375 = vmax.f32 %v371, 0.0
        %v376 = vpack.c.bf16 %v375, %v374
        %v377 = vld [vmem:[%s3] sm:$0xf]
        %v378 = vld [vmem:[%s3 + $0x4] sm:$0xf]
        %v379 = vld [vmem:[%s3 + $0x8] sm:$0xf]
        %v380 = vld [vmem:[%s3 + $0xc] sm:$0xf]
        %v381 = vld [vmem:[%s4] sm:$0x1]
        %v383 = vlaneseq
        %v384 = vshrl.u32 %v383, 7
        %v385 = vsub.s32 0, %v384
        %v386 = vrot.slane %v381, %v385
        %v392 = vunpack.c.l.b16 %v377
        %v393 = vunpack.c.l.b16 %v378
        %v394 = vunpack.c.l.b16 %v379
        %v395 = vunpack.c.l.b16 %v380
        %v396 = vpack.c.b16 %v393, %v392
        %v397 = vpack.c.b16 %v395, %v394
        %v401 = vsel %vm329, %v376, 0
        %403 = vmatprep.subr.bf16.mxu0 0
        %404 = vmatpush1.bf16.msra.mxu0 %v396
        %405 = vmatprep.subr.bf16.mxu0 0
        %406 = vmatpush1.bf16.msra.mxu0 %v397
        %407 = vmatprep.subr.bf16.mxu0 0
        %408 = vmatpush1.bf16.msra.mxu0 0
        %409 = vmatprep.subr.bf16.mxu0 0
        %410 = vmatpush1.bf16.msra.mxu0 0
        %411 = vmatprep.subr.bf16.mxu0 0
        %412 = vmatpush1.bf16.msra.mxu0 0
        %413 = vmatprep.subr.bf16.mxu0 0
        %414 = vmatpush1.bf16.msra.mxu0 0
        %415 = vmatprep.subr.bf16.mxu0 0
        %416 = vmatpush1.bf16.msra.mxu0 0
        %417 = vmatprep.subr.bf16.mxu0 0
        %418 = vmatpush1.bf16.msra.mxu0 0
        %419 = vmatprep.subr.bf16.mxu0 0
        %420 = vmatpush1.bf16.msra.mxu0 0
        %421 = vmatprep.subr.bf16.mxu0 0
        %422 = vmatpush1.bf16.msra.mxu0 0
        %423 = vmatprep.subr.bf16.mxu0 0
        %424 = vmatpush1.bf16.msra.mxu0 0
        %425 = vmatprep.subr.bf16.mxu0 0
        %426 = vmatpush1.bf16.msra.mxu0 0
        %427 = vmatprep.subr.bf16.mxu0 0
        %428 = vmatpush1.bf16.msra.mxu0 0
        %429 = vmatprep.subr.bf16.mxu0 0
        %430 = vmatpush1.bf16.msra.mxu0 0
        %431 = vmatprep.subr.bf16.mxu0 0
        %432 = vmatpush1.bf16.msra.mxu0 0
        %433 = vmatprep.subr.bf16.mxu0 0
        %434 = vmatpush1.bf16.msra.mxu0 0
        %435 = vmatprep.mubr.bf16.mxu0 0
        %436 = vmatmul.mubr.bf16.gmra.mrb[0].mxu0 %v401
        %v437 = vpop.f32.mrb[0].mxu0
        %v438 = vadd.f32 %v386, %v437
        %v439 = vpop.f32.mrb[0].mxu0
        %v440 = vpop.f32.mrb[0].mxu0
        %v441 = vadd.f32 %v386, %v440
        %v442 = vpop.f32.mrb[0].mxu0
        %443 = vdwg.mxu0
        %v444 = vmax.f32 %v438, 0.0
        %v445 = vmax.f32 %v441, 0.0
        %v446 = vld [vmem:[%s5] sm:$0x1]
        %v448 = vlaneseq
        %v449 = vshrl.u32 %v448, 7
        %v450 = vsub.s32 0, %v449
        %v451 = vrot.slane %v446, %v450
        %v453 = vmul.f32 %v444, %v451
        %v454 = vmul.f32 %v445, %v451
        %v455 = vsel %vm329, %v453, 0.0
        %456 = vadd.xlane.f32.xlu0 %v455
        %v457 = vpop.xlane.xlu0 %456
        %v458 = vsel %vm329, %v454, 0.0
        %459 = vadd.xlane.f32.xlu0 %v458
        %v460 = vpop.xlane.xlu0 %459
        %v461 = vld [vmem:[#allocation2] sm:$0x1]
        %v463 = vlaneseq
        %v464 = vshrl.u32 %v463, 7
        %v465 = vsub.s32 0, %v464
        %v466 = vrot.slane %v461, %v465
        %v468 = vadd.f32 %v457, %v466
        %v469 = vadd.f32 %v460, %v466
        %vm470 = vcmask 7168
        %471 = vst.msk [vmem:[%s282] sm:$0xff] %vm470, %v468
        %472 = vst.msk [vmem:[%s282 + $0x8] sm:$0xff] %vm470, %v469
        %s473 = sand.u32 %s180, 1
        %s474 = sand.u32 %s180, 1
        %s475 = smul.addr %s474, 16
        %s476 = scalar_lea.vmem [#allocation3], %s475
        // Predicated region
        $region49: #{tpu_custom_call.1} parent=47 // pred_check
          %p477 = pneg %p190
        $region50: #{tpu_custom_call.1} parent=47 // pred_check_branch
          %479 = sbr.rel (%p477) target = $region52
        $region51: #{tpu_custom_call.1} parent=47 // pred_region
          %s480 = smul.u32 2, %s20
          %s481 = ssub.s32 5, %s480
          %p482 = scmp.lt.s32.totalorder %s481, 2
          %s483 = scalar_select %p482, %s481, 2
          %s484 = smul.u32 128, %s483
          %p485 = scmp.ne.s32.totalorder 0, %s484
          %s486 = smul.addr %s480, 8
          %s487 = scalar_lea.vmem %s7, %s486
          // Predicated region
          $region53: #{tpu_custom_call.1} parent=51 // pred_check
            %p488 = pneg %p485
          $region54: #{tpu_custom_call.1} parent=51 // pred_check_branch
            %490 = sbr.rel (%p488) target = $region56
          $region55: #{tpu_custom_call.1} parent=51 // pred_region
            // Predicated region
            $region57: #{tpu_custom_call.1} parent=55 // pred_check
              _
            $region58: #{tpu_custom_call.1} parent=55 // pred_check_branch
              %492 = sbr.rel (0) target = $region60
            $region59: #{tpu_custom_call.1} parent=55 // pred_region
              // Predicated region
              $region79: #{tpu_custom_call.1} parent=59 // pred_check
                _
              $region80: #{tpu_custom_call.1} parent=59 // pred_check_branch
                %543 = sbr.rel (0) target = $region82
              $region81: #{tpu_custom_call.1} parent=59 // pred_region
                %s544 = sshrl.u32 %s483, 1
                // While loop
                $region83: #{tpu_custom_call.1} parent=81 // loop_pre_header
                  _
                $region84: #{tpu_custom_call.1} parent=81 // loop_header
                  %s546 = sphi 0, %s548
                  %p547 = scmp.ge.s32.totalorder %s546, %s544
                  %s551 = sphi 0, %s560
                  %s552 = sphi %s476, %s563
                  %s553 = sphi %s487, %s564
                $region85: #{tpu_custom_call.1} parent=81 // loop_header_branch
                  %550 = sbr.rel (%p547) target = $region89
                $region86: #{tpu_custom_call.1} parent=81 // loop_body
                  %v554 = vld [vmem:[%s552] sm:$0xff]
                  %555 = vst [vmem:[%s553] sm:$0xff] %v554
                  %v556 = vld [vmem:[%s552 + $0x8] sm:$0xff]
                  %557 = vst [vmem:[%s553 + $0x8] sm:$0xff] %v556
                  %s558 = sadd.s32 1, %s551
                  %p559 = scmp.ge.s32.totalorder %s558, %s544
                  %s560 = scalar_select %p559, 0, %s558
                  %s561 = smul.u32 %s560, 16
                  %s562 = smul.u32 %s560, 16
                  %s563 = scalar_lea.vmem %s476, %s561 [#allocation3]
                  %s564 = scalar_lea.vmem %s487, %s562
                $region87: #{tpu_custom_call.1} parent=81 // loop_footer
                  %s548 = sadd.s32 %s546, 1
                $region88: #{tpu_custom_call.1} parent=81 // loop_footer_branch
                  %545 = sbr.rel target = $region84
                $region89: #{tpu_custom_call.1} parent=81 // loop_exit
                  _
                %s565 = sshrl.u32 %s483, 1
                %s566 = sand.u32 %s483, 1
                %s567 = smul.u32 %s565, 2
                %s568 = smul.u32 8, %s567
                %s569 = scalar_lea.vmem %s476, %s568 [#allocation3]
                %s570 = smul.u32 8, %s567
                %s571 = scalar_lea.vmem %s487, %s570
                // While loop
                $region90: #{tpu_custom_call.1} parent=81 // loop_pre_header
                  _
                $region91: #{tpu_custom_call.1} parent=81 // loop_header
                  %s573 = sphi 0, %s575
                  %p574 = scmp.ge.s32.totalorder %s573, %s566
                  %s578 = sphi 0, %s585
                  %s579 = sphi %s569, %s588
                  %s580 = sphi %s571, %s589
                $region92: #{tpu_custom_call.1} parent=81 // loop_header_branch
                  %577 = sbr.rel (%p574) target = $region96
                $region93: #{tpu_custom_call.1} parent=81 // loop_body
                  %v581 = vld [vmem:[%s579] sm:$0xff]
                  %582 = vst [vmem:[%s580] sm:$0xff] %v581
                  %s583 = sadd.s32 1, %s578
                  %p584 = scmp.ge.s32.totalorder %s583, %s566
                  %s585 = scalar_select %p584, 0, %s583
                  %s586 = smul.u32 %s585, 8
                  %s587 = smul.u32 %s585, 8
                  %s588 = scalar_lea.vmem %s569, %s586 [#allocation3]
                  %s589 = scalar_lea.vmem %s571, %s587
                $region94: #{tpu_custom_call.1} parent=81 // loop_footer
                  %s575 = sadd.s32 %s573, 1
                $region95: #{tpu_custom_call.1} parent=81 // loop_footer_branch
                  %572 = sbr.rel target = $region91
                $region96: #{tpu_custom_call.1} parent=81 // loop_exit
                  _
              $region82: #{tpu_custom_call.1} parent=59 // pred_fallthru
                _
              // Predicated region
              $region97: #{tpu_custom_call.1} parent=59 // pred_check
                _
              $region98: #{tpu_custom_call.1} parent=59 // pred_check_branch
                %591 = sbr.rel target = $region100
              $region99: #{tpu_custom_call.1} parent=59 // pred_region
                _
              $region100: #{tpu_custom_call.1} parent=59 // pred_fallthru
                _
            $region60: #{tpu_custom_call.1} parent=55 // pred_fallthru
              _
            // Predicated region
            $region61: #{tpu_custom_call.1} parent=55 // pred_check
              _
            $region62: #{tpu_custom_call.1} parent=55 // pred_check_branch
              %494 = sbr.rel target = $region64
            $region63: #{tpu_custom_call.1} parent=55 // pred_region
              %s496 = sshrl.u32 %s483, 1
              // While loop
              $region65: #{tpu_custom_call.1} parent=63 // loop_pre_header
                _
              $region66: #{tpu_custom_call.1} parent=63 // loop_header
                %s498 = sphi 0, %s500
                %p499 = scmp.ge.s32.totalorder %s498, %s496
                %s503 = sphi 0, %s512
                %s504 = sphi %s476, %s515
                %s505 = sphi %s487, %s516
              $region67: #{tpu_custom_call.1} parent=63 // loop_header_branch
                %502 = sbr.rel (%p499) target = $region71
              $region68: #{tpu_custom_call.1} parent=63 // loop_body
                %v506 = vld [vmem:[%s504] sm:$0xff]
                %507 = vst [vmem:[%s505] sm:$0xff] %v506
                %v508 = vld [vmem:[%s504 + $0x8] sm:$0xff]
                %509 = vst [vmem:[%s505 + $0x8] sm:$0xff] %v508
                %s510 = sadd.s32 1, %s503
                %p511 = scmp.ge.s32.totalorder %s510, %s496
                %s512 = scalar_select %p511, 0, %s510
                %s513 = smul.u32 %s512, 16
                %s514 = smul.u32 %s512, 16
                %s515 = scalar_lea.vmem %s476, %s513 [#allocation3]
                %s516 = scalar_lea.vmem %s487, %s514
              $region69: #{tpu_custom_call.1} parent=63 // loop_footer
                %s500 = sadd.s32 %s498, 1
              $region70: #{tpu_custom_call.1} parent=63 // loop_footer_branch
                %497 = sbr.rel target = $region66
              $region71: #{tpu_custom_call.1} parent=63 // loop_exit
                _
              %s517 = sshrl.u32 %s483, 1
              %s518 = sand.u32 %s483, 1
              %s519 = smul.u32 %s517, 2
              %s520 = smul.u32 8, %s519
              %s521 = scalar_lea.vmem %s476, %s520 [#allocation3]
              %s522 = smul.u32 8, %s519
              %s523 = scalar_lea.vmem %s487, %s522
              // While loop
              $region72: #{tpu_custom_call.1} parent=63 // loop_pre_header
                _
              $region73: #{tpu_custom_call.1} parent=63 // loop_header
                %s525 = sphi 0, %s527
                %p526 = scmp.ge.s32.totalorder %s525, %s518
                %s530 = sphi 0, %s537
                %s531 = sphi %s521, %s540
                %s532 = sphi %s523, %s541
              $region74: #{tpu_custom_call.1} parent=63 // loop_header_branch
                %529 = sbr.rel (%p526) target = $region78
              $region75: #{tpu_custom_call.1} parent=63 // loop_body
                %v533 = vld [vmem:[%s531] sm:$0xff]
                %534 = vst [vmem:[%s532] sm:$0xff] %v533
                %s535 = sadd.s32 1, %s530
                %p536 = scmp.ge.s32.totalorder %s535, %s518
                %s537 = scalar_select %p536, 0, %s535
                %s538 = smul.u32 %s537, 8
                %s539 = smul.u32 %s537, 8
                %s540 = scalar_lea.vmem %s521, %s538 [#allocation3]
                %s541 = scalar_lea.vmem %s523, %s539
              $region76: #{tpu_custom_call.1} parent=63 // loop_footer
                %s527 = sadd.s32 %s525, 1
              $region77: #{tpu_custom_call.1} parent=63 // loop_footer_branch
                %524 = sbr.rel target = $region73
              $region78: #{tpu_custom_call.1} parent=63 // loop_exit
                _
            $region64: #{tpu_custom_call.1} parent=55 // pred_fallthru
              _
          $region56: #{tpu_custom_call.1} parent=51 // pred_fallthru
            _
          %592 = vnop
        $region52: #{tpu_custom_call.1} parent=47 // pred_fallthru
          _
      $region48: #{tpu_custom_call.1} parent=5 // pred_fallthru
        _
      %p593 = scmp.le.s32.totalorder 2, %s15
      // Predicated region
      $region101: #{tpu_custom_call.1} parent=5 // pred_check
        %p594 = pneg %p593
      $region102: #{tpu_custom_call.1} parent=5 // pred_check_branch
        %596 = sbr.rel (%p594) target = $region104
      $region103: #{tpu_custom_call.1} parent=5 // pred_region
        %s597 = ssub.s32 %s15, 2
        // Predicated region
        $region105: #{tpu_custom_call.1} parent=103 // pred_check
          %p598 = pneg %p196
        $region106: #{tpu_custom_call.1} parent=103 // pred_check_branch
          %600 = sbr.rel (%p598) target = $region108
        $region107: #{tpu_custom_call.1} parent=103 // pred_region
          %s601 = sand.u32 %s181, 1
          %s602 = sand.u32 %s181, 1
          %s603 = smul.addr %s602, 16
          %s604 = scalar_lea.vmem [#allocation3], %s603
        $region108: #{tpu_custom_call.1} parent=103 // pred_fallthru
          _
      $region104: #{tpu_custom_call.1} parent=5 // pred_fallthru
        _
    $region6: #{tpu_custom_call.1} parent=1 // loop_footer
      %s19 = sadd.s32 1, %s15
    $region7: #{tpu_custom_call.1} parent=1 // loop_footer_branch
      %14 = sbr.rel target = $region3
    $region8: #{tpu_custom_call.1} parent=1 // loop_exit
      _

</llo_original>
